<compile_context>
chip_gen: v5e
topology: v5e:2x2
jax: 0.10.0
libtpu: 0.0.40
codegen_flags: <defaults>
</compile_context>

<pallas_src>
import functools
import math

import jax
import jax.numpy as jnp
from jax.experimental import pallas as pl
from jax.experimental.pallas import tpu as pltpu

_LANE = 128
_MAX_TILE_ROWS = 4096          # 4096 x 128 f32 = 2 MiB per input tile
_ACC_ROWS = 32                 # accumulator sublanes (independent add chains)
_SMALL_INPUT_ELEMS = 1 << 15   # below this, a fused jnp expression is faster


def _round_up(x, m):
    return ((x + m - 1) // m) * m


def _sublane_multiple(dtype):
    # Minimum second-to-last block dim: 8 (32-bit), 16 (16-bit), 32 (8-bit).
    bits = jnp.dtype(dtype).itemsize * 8
    return max(8, 256 // bits)


def _hash_loss_kernel(f1_ref, f2_ref, o_ref, acc_ref, *,
                      tiles_per_partial, tile_rows, valid_rows, needs_mask):
    c = pl.program_id(0)   # partial index ("parallel" -> TensorCores on v7x)
    i = pl.program_id(1)   # row-tile within the partial ("arbitrary")

    @pl.when(i == 0)
    def _():
        acc_ref[...] = jnp.zeros_like(acc_ref)

    # Hot path: pure VPU work on a lane-dense tile.
    d = jnp.abs(f1_ref[...].astype(jnp.float32) - f2_ref[...].astype(jnp.float32))

    if needs_mask:
        # Zero rows past the end of the slab: covers the partial last tile
        # and fully out-of-bounds tiles whose block index got clamped.
        row_start = (c * tiles_per_partial + i) * tile_rows
        row_idx = row_start + jax.lax.broadcasted_iota(jnp.int32, d.shape, 0)
        d = jnp.where(row_idx < valid_rows, d, 0.0)

    acc_rows = acc_ref.shape[0]
    acc_ref[...] += jnp.sum(d.reshape(-1, acc_rows, _LANE), axis=0)

    # Write this partial's accumulator once, on its last row-tile.
    @pl.when(i == tiles_per_partial - 1)
    def _():
        o_ref[0] = acc_ref[...]


def hash_loss(global_feature_1, global_feature_2, *,
              max_tile_rows=_MAX_TILE_ROWS, force_pallas=False):
    assert global_feature_1.shape == global_feature_2.shape
    assert global_feature_1.ndim == 2
    B, S = global_feature_1.shape
    n = B * S
    inv_bs = 1.0 / float(n)   # sum / (B*S) == mean-of-row-means

    # Fast path: tiny inputs are dominated by pallas_call launch overhead.
    if not force_pallas and n < _SMALL_INPUT_ELEMS:
        d = jnp.sum(jnp.abs(global_feature_1.astype(jnp.float32)
                            - global_feature_2.astype(jnp.float32)))
        return jnp.exp(d * inv_bs)

    dtype = global_feature_1.dtype
    sub = _sublane_multiple(dtype)

    # Lane-dense slab.  Pad only to the minimal (sub x 128) granularity; when
    # n is already a multiple of it, ravel+reshape is a free bitcast (no copy).
    rows = pl.cdiv(n, _LANE)
    rows_min = _round_up(rows, sub)
    n_pad = rows_min * _LANE

    def _to_slab(x):
        x = jnp.ravel(x)
        if n_pad != n:
            x = jnp.pad(x, (0, n_pad - n))     # zeros are exact for sum|a-b|
        return x.reshape(rows_min, _LANE)

    f1 = _to_slab(global_feature_1)
    f2 = _to_slab(global_feature_2)

    # Tile selection: big, sublane-aligned row tiles (multiple of 32 so the
    # f32 accumulator reshape and any packed-dtype min tiling both hold).
    tile_rows = min(_round_up(max_tile_rows, _ACC_ROWS), rows_min)
    acc_rows = math.gcd(tile_rows, _ACC_ROWS)

    total_tiles = pl.cdiv(rows_min, tile_rows)
    num_partials = 2 if total_tiles >= 2 else 1   # 2 TCs on v7x; harmless elsewhere
    tiles_per_partial = pl.cdiv(total_tiles, num_partials)
    needs_mask = (rows_min % tile_rows != 0) or (
        num_partials * tiles_per_partial != total_tiles)

    def in_map(c, i):
        # Clamp so fully out-of-bounds tiles read a valid (then masked) block.
        return (jnp.minimum(c * tiles_per_partial + i, total_tiles - 1), 0)

    kernel = functools.partial(
        _hash_loss_kernel,
        tiles_per_partial=tiles_per_partial,
        tile_rows=tile_rows,
        valid_rows=rows_min,
        needs_mask=needs_mask,
    )

    itemsize = jnp.dtype(dtype).itemsize
    partials = pl.pallas_call(
        kernel,
        out_shape=jax.ShapeDtypeStruct((num_partials, acc_rows, _LANE), jnp.float32),
        grid_spec=pltpu.PrefetchScalarGridSpec(
            num_scalar_prefetch=0,
            grid=(num_partials, tiles_per_partial),
            in_specs=[
                pl.BlockSpec((tile_rows, _LANE), in_map),
                pl.BlockSpec((tile_rows, _LANE), in_map),
            ],
            out_specs=pl.BlockSpec((1, acc_rows, _LANE), lambda c, i: (c, 0, 0)),
            scratch_shapes=[pltpu.VMEM((acc_rows, _LANE), jnp.float32)],
        ),
        compiler_params=pltpu.CompilerParams(
            dimension_semantics=("parallel", "arbitrary"),
        ),
        cost_estimate=pl.CostEstimate(
            flops=3 * n,
            transcendentals=0,
            bytes_accessed=2 * n_pad * itemsize + num_partials * acc_rows * _LANE * 4,
        ),
    )(f1, f2)

    # Tiny epilogue: cross-lane reduce of (num_partials, acc_rows, 128) + exp.
    return jnp.exp(jnp.sum(partials) * inv_bs)


def hash_loss_ref(f1, f2):
    B, S = f1.shape
    d = jnp.sum(jnp.abs(f1 - f2), axis=1) / S
    d = jnp.sum(d) / B
    return jnp.exp(d)


if __name__ == "__main__":
    key = jax.random.PRNGKey(0)
    k1, k2, k3, k4 = jax.random.split(key, 4)

    # 1) Module-typical small shape, forced through the Pallas path.
    B, S = 2, 32
    f1 = jax.random.normal(k1, (B, S), dtype=jnp.float32)
    f2 = jax.random.normal(k2, (B, S), dtype=jnp.float32)
    out = hash_loss(f1, f2, force_pallas=True)
    jax.block_until_ready(out)
    ref = hash_loss_ref(f1, f2)
    assert jnp.allclose(out, ref, rtol=1e-5, atol=1e-6), (out, ref)

    # Auto dispatch takes the fused-XLA fast path for tiny inputs.
    out_fast = hash_loss(f1, f2)
    jax.block_until_ready(out_fast)
    assert jnp.allclose(out_fast, ref, rtol=1e-5, atol=1e-6), (out_fast, ref)

    # 2) Multi-tile reduction with a ragged tail: exercises minimal padding,
    #    the 2-way partial split, in-kernel row masking, and the clamped
    #    out-of-bounds tile (small tiles forced via max_tile_rows).
    B2, S2 = 8, 1312    # n = 10496 -> 82 rows -> 88 padded rows, 3 tiles of 32
    g1 = jax.random.normal(k3, (B2, S2), dtype=jnp.float32)
    g2 = jax.random.normal(k4, (B2, S2), dtype=jnp.float32)
    out2 = hash_loss(g1, g2, force_pallas=True, max_tile_rows=32)
    jax.block_until_ready(out2)
    ref2 = hash_loss_ref(g1, g2)
    assert jnp.allclose(out2, ref2, rtol=1e-4, atol=1e-5), (out2, ref2)

    # 3) bf16 inputs: halved HBM traffic, 16-sublane min tiling, no padding.
    h1 = jax.random.normal(k3, (4, 4096), dtype=jnp.float32).astype(jnp.bfloat16)
    h2 = jax.random.normal(k4, (4, 4096), dtype=jnp.float32).astype(jnp.bfloat16)
    out3 = hash_loss(h1, h2, force_pallas=True)
    jax.block_until_ready(out3)
    ref3 = hash_loss_ref(h1.astype(jnp.float32), h2.astype(jnp.float32))
    assert jnp.allclose(out3, ref3, rtol=2e-2, atol=2e-2), (out3, ref3)

    print("KERNEL_OK")
</pallas_src>

<mosaic_0001>
module attributes {stable_mosaic.version = 11 : i64} {
  func.func @_hash_loss_kernel(%arg0: i32, %arg1: i32, %arg2: memref<8x128xf32, #tpu.memory_space<vmem>>, %arg3: memref<8x128xf32, #tpu.memory_space<vmem>>, %arg4: memref<1x8x128xf32, #tpu.memory_space<vmem>>, %arg5: memref<8x128xf32, #tpu.memory_space<vmem>>) attributes {dimension_semantics = [#tpu.dimension_semantics<parallel>, #tpu.dimension_semantics<arbitrary>], iteration_bounds = array<i64: 1, 1>, scalar_prefetch = 0 : i64, scratch_operands = 1 : i64, tpu.core_type = #tpu.core_type<tc>, window_params = [{transform_indices = @transform_0, window_bounds = array<i64: 8, 128>}, {transform_indices = @transform_1, window_bounds = array<i64: 8, 128>}, {transform_indices = @transform_2, window_bounds = array<i64: 1, 8, 128>}]} {
    %c0_i32 = arith.constant 0 : i32
    %0 = arith.cmpi eq, %arg1, %c0_i32 : i32
    %1 = arith.extui %0 : i1 to i32
    %c0_i32_0 = arith.constant 0 : i32
    %2 = arith.cmpi ne, %1, %c0_i32_0 : i32
    scf.if %2 {
      %cst_10 = arith.constant 0.000000e+00 : f32
      %15 = vector.broadcast %cst_10 : f32 to vector<8x128xf32>
      %c0_11 = arith.constant 0 : index
      %c0_12 = arith.constant 0 : index
      %16 = vector.load %arg5[%c0_11, %c0_12] : memref<8x128xf32, #tpu.memory_space<vmem>>, vector<8x128xf32>
      tpu.vector_store %arg5[%c0_11, %c0_12], %15 {strides = array<i32>} : memref<8x128xf32, #tpu.memory_space<vmem>>, vector<8x128xf32>,
    } else {
    }
    %c0 = arith.constant 0 : index
    %c0_1 = arith.constant 0 : index
    %3 = vector.load %arg2[%c0, %c0_1] : memref<8x128xf32, #tpu.memory_space<vmem>>, vector<8x128xf32>
    %c0_2 = arith.constant 0 : index
    %c0_3 = arith.constant 0 : index
    %4 = vector.load %arg3[%c0_2, %c0_3] : memref<8x128xf32, #tpu.memory_space<vmem>>, vector<8x128xf32>
    %5 = arith.subf %3, %4 : vector<8x128xf32>
    %6 = math.absf %5 : vector<8x128xf32>
    %c0_4 = arith.constant 0 : index
    %c0_5 = arith.constant 0 : index
    %7 = vector.load %arg5[%c0_4, %c0_5] : memref<8x128xf32, #tpu.memory_space<vmem>>, vector<8x128xf32>
    %8 = vector.shape_cast %6 : vector<8x128xf32> to vector<1x8x128xf32>
    %cst = arith.constant dense<0.000000e+00> : vector<8x128xf32>
    %9 = vector.multi_reduction <add>, %8, %cst [0] : vector<1x8x128xf32> to vector<8x128xf32>
    %10 = arith.addf %7, %9 : vector<8x128xf32>
    %c0_6 = arith.constant 0 : index
    %c0_7 = arith.constant 0 : index
    %11 = vector.load %arg5[%c0_6, %c0_7] : memref<8x128xf32, #tpu.memory_space<vmem>>, vector<8x128xf32>
    tpu.vector_store %arg5[%c0_6, %c0_7], %10 {strides = array<i32>} : memref<8x128xf32, #tpu.memory_space<vmem>>, vector<8x128xf32>,
    %c0_i32_8 = arith.constant 0 : i32
    %12 = arith.cmpi eq, %arg1, %c0_i32_8 : i32
    %13 = arith.extui %12 : i1 to i32
    %c0_i32_9 = arith.constant 0 : i32
    %14 = arith.cmpi ne, %13, %c0_i32_9 : i32
    scf.if %14 {
      %c0_10 = arith.constant 0 : index
      %c0_11 = arith.constant 0 : index
      %15 = vector.load %arg5[%c0_10, %c0_11] : memref<8x128xf32, #tpu.memory_space<vmem>>, vector<8x128xf32>
      %c0_12 = arith.constant 0 : index
      %c0_13 = arith.constant 0 : index
      %c0_14 = arith.constant 0 : index
      %16 = vector.load %arg4[%c0_12, %c0_13, %c0_14] : memref<1x8x128xf32, #tpu.memory_space<vmem>>, vector<1x8x128xf32>
      %17 = vector.shape_cast %16 : vector<1x8x128xf32> to vector<8x128xf32>
      %18 = vector.shape_cast %15 : vector<8x128xf32> to vector<1x8x128xf32>
      tpu.vector_store %arg4[%c0_12, %c0_13, %c0_14], %18 {strides = array<i32>} : memref<1x8x128xf32, #tpu.memory_space<vmem>>, vector<1x8x128xf32>,
    } else {
    }
    return
  }
  func.func @transform_0(%arg0: i32, %arg1: i32) -> (i32, i32) {
    %c1_i32 = arith.constant 1 : i32
    %0 = arith.muli %arg0, %c1_i32 : i32
    %1 = arith.addi %0, %arg1 : i32
    %c0_i32 = arith.constant 0 : i32
    %2 = arith.minsi %1, %c0_i32 : i32
    %c0_i32_0 = arith.constant 0 : i32
    %c0_i32_1 = arith.constant 0 : i32
    return %2, %c0_i32_0 : i32, i32
  }
  func.func @transform_1(%arg0: i32, %arg1: i32) -> (i32, i32) {
    %c1_i32 = arith.constant 1 : i32
    %0 = arith.muli %arg0, %c1_i32 : i32
    %1 = arith.addi %0, %arg1 : i32
    %c0_i32 = arith.constant 0 : i32
    %2 = arith.minsi %1, %c0_i32 : i32
    %c0_i32_0 = arith.constant 0 : i32
    %c0_i32_1 = arith.constant 0 : i32
    return %2, %c0_i32_0 : i32, i32
  }
  func.func @transform_2(%arg0: i32, %arg1: i32) -> (i32, i32, i32) {
    %c0_i32 = arith.constant 0 : i32
    %c0_i32_0 = arith.constant 0 : i32
    %c0_i32_1 = arith.constant 0 : i32
    return %arg0, %c0_i32, %c0_i32_0 : i32, i32, i32
  }
}

</mosaic_0001>

<llo_original>
// kernel: tpu_custom_call.1
$region0: #{tpu_custom_call.1}
  #allocation0 [shape = 'u32[]', space=smem, size = 0x4, offset = 0x4, fixed_abs, tag = 'smem constant byte address 0x4 - core index']
  #allocation1 [shape = 'u32[72,128]{1,0:T(1,128)}', space=vmem, size = 0x9000, scoped, tag = 'internal scratch']
  #allocation2 [shape = 'f32[8,128]{1,0:T(8,128)}', space=vmem, size = 0x1000, scoped, tag = 'scratch operand']
  %s0 = inlined_call_operand.hbm [shape: f32[8,128], index: 0, kind: input, shape index: {}]
  %s1 = inlined_call_operand.hbm [shape: f32[8,128], index: 1, kind: input, shape index: {}]
  %s2 = inlined_call_operand.hbm [shape: f32[1,8,128], index: 2, kind: output, shape index: {}]
  %s3 = sld [smem:[#allocation0]]
  $region34: #{tpu_custom_call.1} parent=0
    _
  %s5 = ssub.s32 1, %s3
  %s6 = scalar_select 0, %s5, %s3
  $region1: #{tpu_custom_call.1} parent=0
    #allocation3 [shape = 'u8[4096]{0}', space=vmem, size = 0x1000, scoped, tag = 'input window, operand 0, single buffered']
    #allocation4 [shape = 's32[1]{0}', space=sflag, size = 0x4, scoped, tag = 'scoped memory for tpu_custom_call.1']
    #allocation5 [shape = 's32[1]{0}', space=sflag, size = 0x4, scoped, tag = 'scoped memory for tpu_custom_call.1']
    #allocation6 [shape = 'u8[4096]{0}', space=vmem, size = 0x1000, scoped, tag = 'input window, operand 1, single buffered']
    #allocation7 [shape = 's32[1]{0}', space=sflag, size = 0x4, scoped, tag = 'scoped memory for tpu_custom_call.1']
    #allocation8 [shape = 'u8[4096]{0}', space=vmem, size = 0x1000, scoped, tag = 'output window, operand 0, single buffered']
    %7 = vsyncpa [#allocation4], 0
    %8 = vsyncpa [#allocation7], 0
    %9 = vsyncpa [#allocation5], 0
    // Predicated region
    $region2: #{tpu_custom_call.1} parent=1 // pred_check
      _
    $region3: #{tpu_custom_call.1} parent=1 // pred_check_branch
      %11 = sbr.rel (0) target = $region5
    $region4: #{tpu_custom_call.1} parent=1 // pred_region
      %s12 = sadd.s32 0, 0
      %p13 = scmp.lt.s32.totalorder %s12, 0
      %s14 = scalar_select %p13, %s12, 0
      %16 = vsyncadd [#allocation4], 0
      %s17 = smul.addr %s14, 8
      %s18 = scalar_lea.hbm %s0, %s17
      %s20 = sshll.u32 %s18, 4
      %s21 = int_to_ptr.hbm [resolvable:$true] %s20
      %s22 = sshll.u32 [#allocation3], 4
      %s23 = int_to_ptr.vmem [resolvable:$true] %s22
      %25 = dma.hbm_to_vmem [thread:$0]  %s21, 128, %s23, [#allocation4]
    $region5: #{tpu_custom_call.1} parent=1 // pred_fallthru
      _
    // Predicated region
    $region6: #{tpu_custom_call.1} parent=1 // pred_check
      _
    $region7: #{tpu_custom_call.1} parent=1 // pred_check_branch
      %27 = sbr.rel (0) target = $region9
    $region8: #{tpu_custom_call.1} parent=1 // pred_region
      %s28 = sadd.s32 0, 0
      %p29 = scmp.lt.s32.totalorder %s28, 0
      %s30 = scalar_select %p29, %s28, 0
      %32 = vsyncadd [#allocation7], 0
      %s33 = smul.addr %s30, 8
      %s34 = scalar_lea.hbm %s1, %s33
      %s36 = sshll.u32 %s34, 4
      %s37 = int_to_ptr.hbm [resolvable:$true] %s36
      %s38 = sshll.u32 [#allocation6], 4
      %s39 = int_to_ptr.vmem [resolvable:$true] %s38
      %41 = dma.hbm_to_vmem [thread:$0]  %s37, 128, %s39, [#allocation7]
    $region9: #{tpu_custom_call.1} parent=1 // pred_fallthru
      _
    // Predicated region
    $region10: #{tpu_custom_call.1} parent=1 // pred_check
      _
    $region11: #{tpu_custom_call.1} parent=1 // pred_check_branch
      %43 = sbr.rel (0) target = $region13
    $region12: #{tpu_custom_call.1} parent=1 // pred_region
      %45 = dma.done [#allocation4], 128
    $region13: #{tpu_custom_call.1} parent=1 // pred_fallthru
      _
    // Predicated region
    $region14: #{tpu_custom_call.1} parent=1 // pred_check
      _
    $region15: #{tpu_custom_call.1} parent=1 // pred_check_branch
      %47 = sbr.rel (0) target = $region17
    $region16: #{tpu_custom_call.1} parent=1 // pred_region
      %49 = dma.done [#allocation7], 128
    $region17: #{tpu_custom_call.1} parent=1 // pred_fallthru
      _
    %s50 = sadd.s32 0, 0
    %p51 = scmp.lt.s32.totalorder %s50, 0
    %s52 = scalar_select %p51, %s50, 0
    %s53 = sadd.s32 0, 0
    %p54 = scmp.lt.s32.totalorder %s53, 0
    %s55 = scalar_select %p54, %s53, 0
    %p56 = scmp.eq.s32.totalorder 0, 0
    // Predicated region
    $region18: #{tpu_custom_call.1} parent=1 // pred_check
      %p57 = pneg %p56
    $region19: #{tpu_custom_call.1} parent=1 // pred_check_branch
      %59 = sbr.rel (%p57) target = $region21
    $region20: #{tpu_custom_call.1} parent=1 // pred_region
      %60 = vst [vmem:[#allocation2] sm:$0xff] 0.0
    $region21: #{tpu_custom_call.1} parent=1 // pred_fallthru
      _
    %v61 = vld [vmem:[#allocation3] sm:$0xff]
    %v62 = vld [vmem:[#allocation6] sm:$0xff]
    %v63 = vsub.f32 %v61, %v62
    %v64 = vand.u32 2147483647, %v63
    %v65 = vld [vmem:[#allocation2] sm:$0xff]
    %v66 = vadd.f32 %v64, 0.0
    %v67 = vadd.f32 %v65, %v66
    %68 = vst [vmem:[#allocation2] sm:$0xff] %v67
    // Predicated region
    $region22: #{tpu_custom_call.1} parent=1 // pred_check
      %p69 = pneg %p56
    $region23: #{tpu_custom_call.1} parent=1 // pred_check_branch
      %71 = sbr.rel (%p69) target = $region25
    $region24: #{tpu_custom_call.1} parent=1 // pred_region
      %v72 = vld [vmem:[#allocation2] sm:$0xff]
      %73 = vst [vmem:[#allocation8] sm:$0xff] %v72
    $region25: #{tpu_custom_call.1} parent=1 // pred_fallthru
      _
    // Predicated region
    $region26: #{tpu_custom_call.1} parent=1 // pred_check
      _
    $region27: #{tpu_custom_call.1} parent=1 // pred_check_branch
      %75 = sbr.rel (0) target = $region29
    $region28: #{tpu_custom_call.1} parent=1 // pred_region
      %77 = vsyncadd [#allocation5], 0
      %s79 = sshll.u32 [#allocation8], 4
      %s80 = int_to_ptr.vmem [resolvable:$true] %s79
      %s81 = sshll.u32 %s2, 4
      %s82 = int_to_ptr.hbm [resolvable:$true] %s81
      %84 = dma.vmem_to_hbm [thread:$0]  %s80, 128, %s82, [#allocation5]
    $region29: #{tpu_custom_call.1} parent=1 // pred_fallthru
      _
    // Predicated region
    $region30: #{tpu_custom_call.1} parent=1 // pred_check
      _
    $region31: #{tpu_custom_call.1} parent=1 // pred_check_branch
      %86 = sbr.rel (0) target = $region33
    $region32: #{tpu_custom_call.1} parent=1 // pred_region
      %88 = dma.done [#allocation5], 128
    $region33: #{tpu_custom_call.1} parent=1 // pred_fallthru
      _
    %89 = vsyncpa [#allocation4], 1
    %90 = vsyncpa [#allocation7], 1
    %91 = vsyncpa [#allocation5], 1

</llo_original>
